<compile_context>
chip_gen: v5e
topology: v5e:2x2
jax: 0.10.0
libtpu: 0.0.40
codegen_flags: <defaults>
</compile_context>

<pallas_src>
import functools

import jax
import jax.numpy as jnp
from jax.experimental import pallas as pl
from jax.experimental.pallas import tpu as pltpu


def _conv_bn_act_kernel(p_ref, w_ref, b_ref, o_ref, *, leak):
    """o = act(p @ w + b): MXU matmul + fused folded-BN bias + activation."""
    acc = jnp.dot(p_ref[...], w_ref[...], preferred_element_type=jnp.float32)
    acc = acc + b_ref[...]                      # folded BN bias, (1, Cout)
    if leak == 0:                               # ReLU (module default)
        acc = jnp.maximum(acc, 0.0)
    elif leak != -1:                            # LeakyReLU; leak == -1 -> Identity
        acc = jnp.where(acc > 0, acc, jnp.float32(leak) * acc)
    o_ref[...] = acc.astype(o_ref.dtype)


def _pick_tile_m(m, kdim, cout, target_bytes=2 << 20):
    """Rows per block: ~target_bytes of (patches + out) f32, multiple of 8/256."""
    row_bytes = 4 * (kdim + cout)
    t = int(min(max(8, target_bytes // row_bytes), 4096))
    if t >= 256:
        t = (t // 256) * 256
    else:
        t = (t // 8) * 8
    m_pad8 = ((m + 7) // 8) * 8
    return max(8, min(t, m_pad8))


def conv_bn_relu(x, weight, gamma, beta, running_mean, running_var, *,
                 eps=1e-5, stride=1, dilation=1, groups=1, leak=0):
    """Forward pass of the ConvBNReLU module (NCHW in / NCHW out).

    x:      (N, Cin, H, W)   float32
    weight: (Cout, Cin, K, K) PyTorch OIHW layout, bias-free conv.
    The reference module never passes `padding`, so the conv is un-padded
    (VALID). BatchNorm is folded in eval mode (running statistics).
    """
    if groups != 1:
        # TODO(synk): grouped convolution (groups > 1) is not lowered here.
        raise NotImplementedError("groups != 1 is not supported")

    n, cin, h, w = x.shape
    cout, cin_w, kh, kw = weight.shape
    assert cin_w == cin and kh == kw and kh % 2 == 1
    k = kh

    ho = (h - dilation * (k - 1) - 1) // stride + 1
    wo = (w - dilation * (k - 1) - 1) // stride + 1

    # ---- im2col (NHWC, static strided slices) -------------------------------
    x_nhwc = jnp.transpose(x, (0, 2, 3, 1))
    cols = []
    for ih in range(k):
        h0 = ih * dilation
        for iw in range(k):
            w0 = iw * dilation
            cols.append(x_nhwc[:, h0:h0 + stride * (ho - 1) + 1:stride,
                                  w0:w0 + stride * (wo - 1) + 1:stride, :])
    # last-axis order: [kh, kw, cin] (matches the weight reshape below)
    patches = jnp.concatenate(cols, axis=-1).reshape(n * ho * wo, k * k * cin)

    # ---- fold BatchNorm (eval mode) into the conv weight / bias -------------
    # TODO(synk): training-mode BatchNorm (batch statistics) and the
    # norm_type='instance' option require per-call statistics and are not folded.
    scale = gamma * jax.lax.rsqrt(running_var + eps)                     # (Cout,)
    w2d = jnp.transpose(weight, (2, 3, 1, 0)).reshape(k * k * cin, cout)
    w2d = (w2d * scale[None, :]).astype(x.dtype)
    bias = (beta - running_mean * scale).reshape(1, cout).astype(jnp.float32)

    m, kdim = patches.shape
    tile_m = _pick_tile_m(m, kdim, cout)
    grid = (pl.cdiv(m, tile_m),)

    out2d = pl.pallas_call(
        functools.partial(_conv_bn_act_kernel, leak=leak),
        out_shape=jax.ShapeDtypeStruct((m, cout), x.dtype),
        grid_spec=pltpu.PrefetchScalarGridSpec(
            num_scalar_prefetch=0,
            grid=grid,
            in_specs=[
                pl.BlockSpec((tile_m, kdim), lambda i: (i, 0)),   # patch rows
                pl.BlockSpec((kdim, cout), lambda i: (0, 0)),     # folded weight
                pl.BlockSpec((1, cout), lambda i: (0, 0)),        # folded bias
            ],
            out_specs=pl.BlockSpec((tile_m, cout), lambda i: (i, 0)),
        ),
        compiler_params=pltpu.CompilerParams(
            dimension_semantics=("parallel",)),
    )(patches, w2d, bias)

    return jnp.transpose(out2d.reshape(n, ho, wo, cout), (0, 3, 1, 2))


if __name__ == "__main__":
    key = jax.random.PRNGKey(0)
    k1, k2, k3, k4, k5, k6 = jax.random.split(key, 6)

    N, Cin, H, W = 2, 4, 16, 16
    Cout, K = 8, 3
    eps = 1e-5

    x = jax.random.normal(k1, (N, Cin, H, W), dtype=jnp.float32)
    weight = 0.1 * jax.random.normal(k2, (Cout, Cin, K, K), dtype=jnp.float32)
    gamma = 1.0 + 0.1 * jax.random.normal(k3, (Cout,), dtype=jnp.float32)
    beta = 0.1 * jax.random.normal(k4, (Cout,), dtype=jnp.float32)
    running_mean = 0.1 * jax.random.normal(k5, (Cout,), dtype=jnp.float32)
    running_var = jax.random.uniform(k6, (Cout,), dtype=jnp.float32,
                                     minval=0.5, maxval=1.5)

    y = conv_bn_relu(x, weight, gamma, beta, running_mean, running_var,
                     eps=eps, stride=1, dilation=1, groups=1, leak=0)
    y = jax.block_until_ready(y)

    # ---- reference: conv -> eval-mode BN -> ReLU (plain JAX) ----------------
    y_conv = jax.lax.conv_general_dilated(
        x, weight, window_strides=(1, 1), padding="VALID",
        rhs_dilation=(1, 1), dimension_numbers=("NCHW", "OIHW", "NCHW"),
        precision=jax.lax.Precision.HIGHEST)
    s = gamma / jnp.sqrt(running_var + eps)
    b = beta - running_mean * s
    y_ref = jnp.maximum(y_conv * s[None, :, None, None] + b[None, :, None, None], 0.0)

    assert y.shape == y_ref.shape and y.dtype == x.dtype
    assert jnp.allclose(y, y_ref, atol=1e-2, rtol=1e-2), \
        float(jnp.max(jnp.abs(y - y_ref)))

    print("KERNEL_OK")
</pallas_src>

<mosaic_0001>
module attributes {stable_mosaic.version = 11 : i64} {
  func.func @_conv_bn_act_kernel(%arg0: i32, %arg1: memref<392x36xf32, #tpu.memory_space<vmem>>, %arg2: memref<36x8xf32, #tpu.memory_space<vmem>>, %arg3: memref<1x8xf32, #tpu.memory_space<vmem>>, %arg4: memref<392x8xf32, #tpu.memory_space<vmem>>) attributes {dimension_semantics = [#tpu.dimension_semantics<parallel>], iteration_bounds = array<i64: 1>, scalar_prefetch = 0 : i64, scratch_operands = 0 : i64, tpu.core_type = #tpu.core_type<tc>, window_params = [{transform_indices = @transform_0, window_bounds = array<i64: 392, 36>}, {pipeline_mode = #tpu.pipeline_mode<synchronous>, transform_indices = @transform_1, window_bounds = array<i64: 36, 8>}, {pipeline_mode = #tpu.pipeline_mode<synchronous>, transform_indices = @transform_2, window_bounds = array<i64: 1, 8>}, {transform_indices = @transform_3, window_bounds = array<i64: 392, 8>}]} {
    %c0 = arith.constant 0 : index
    %c0_0 = arith.constant 0 : index
    %0 = vector.load %arg1[%c0, %c0_0] : memref<392x36xf32, #tpu.memory_space<vmem>>, vector<392x36xf32>
    %c0_1 = arith.constant 0 : index
    %c0_2 = arith.constant 0 : index
    %1 = vector.load %arg2[%c0_1, %c0_2] : memref<36x8xf32, #tpu.memory_space<vmem>>, vector<36x8xf32>
    %cst = arith.constant dense<0.000000e+00> : vector<392x8xf32>
    %2 = tpu.matmul %0, %1, %cst {dimension_numbers = #tpu.dot_dimension_numbers<[1], [0], [0], [1], [0, 0, 1, 1], [], []>} : vector<392x36xf32>, vector<36x8xf32>, vector<392x8xf32> -> vector<392x8xf32>
    %c0_3 = arith.constant 0 : index
    %c0_4 = arith.constant 0 : index
    %3 = vector.load %arg3[%c0_3, %c0_4] : memref<1x8xf32, #tpu.memory_space<vmem>>, vector<1x8xf32>
    %4 = vector.broadcast %3 : vector<1x8xf32> to vector<392x8xf32>
    %5 = arith.addf %2, %4 : vector<392x8xf32>
    %cst_5 = arith.constant 0.000000e+00 : f32
    %6 = vector.broadcast %cst_5 : f32 to vector<392x8xf32>
    %7 = arith.maximumf %5, %6 : vector<392x8xf32>
    %c0_6 = arith.constant 0 : index
    %c0_7 = arith.constant 0 : index
    %8 = vector.load %arg4[%c0_6, %c0_7] : memref<392x8xf32, #tpu.memory_space<vmem>>, vector<392x8xf32>
    tpu.vector_store %arg4[%c0_6, %c0_7], %7 {strides = array<i32>} : memref<392x8xf32, #tpu.memory_space<vmem>>, vector<392x8xf32>,
    return
  }
  func.func @transform_0(%arg0: i32) -> (i32, i32) {
    %c0_i32 = arith.constant 0 : i32
    %c0_i32_0 = arith.constant 0 : i32
    return %arg0, %c0_i32 : i32, i32
  }
  func.func @transform_1(%arg0: i32) -> (i32, i32) {
    %c0_i32 = arith.constant 0 : i32
    %c0_i32_0 = arith.constant 0 : i32
    %c0_i32_1 = arith.constant 0 : i32
    return %c0_i32, %c0_i32_0 : i32, i32
  }
  func.func @transform_2(%arg0: i32) -> (i32, i32) {
    %c0_i32 = arith.constant 0 : i32
    %c0_i32_0 = arith.constant 0 : i32
    %c0_i32_1 = arith.constant 0 : i32
    return %c0_i32, %c0_i32_0 : i32, i32
  }
  func.func @transform_3(%arg0: i32) -> (i32, i32) {
    %c0_i32 = arith.constant 0 : i32
    %c0_i32_0 = arith.constant 0 : i32
    return %arg0, %c0_i32 : i32, i32
  }
}

</mosaic_0001>

<llo_original>
// kernel: tpu_custom_call.1
$region0: #{tpu_custom_call.1}
  #allocation0 [shape = 'u32[]', space=smem, size = 0x4, offset = 0x4, fixed_abs, tag = 'smem constant byte address 0x4 - core index']
  #allocation1 [shape = 'u32[72,128]{1,0:T(1,128)}', space=vmem, size = 0x9000, scoped, tag = 'internal scratch']
  %s0 = inlined_call_operand.vmem [shape: f32[392,36], index: 0, kind: input, shape index: {}]
  %s1 = inlined_call_operand.vmem [shape: f32[36,8], index: 1, kind: input, shape index: {}]
  %s2 = inlined_call_operand.vmem [shape: f32[1,8], index: 2, kind: input, shape index: {}]
  %s3 = inlined_call_operand.vmem [shape: f32[392,8], index: 3, kind: output, shape index: {}]
  %s4 = sld [smem:[#allocation0]]
  $region22: #{tpu_custom_call.1} parent=0
    _
  %s6 = ssub.s32 1, %s4
  %s7 = scalar_select 0, %s6, %s4
  // Predicated region
  $region2: #{tpu_custom_call.1} parent=0 // pred_check
    _
  $region3: #{tpu_custom_call.1} parent=0 // pred_check_branch
    %9 = sbr.rel (0) target = $region5
  $region4: #{tpu_custom_call.1} parent=0 // pred_region
    _
  $region5: #{tpu_custom_call.1} parent=0 // pred_fallthru
    _
  // Predicated region
  $region6: #{tpu_custom_call.1} parent=0 // pred_check
    _
  $region7: #{tpu_custom_call.1} parent=0 // pred_check_branch
    %11 = sbr.rel (0) target = $region9
  $region8: #{tpu_custom_call.1} parent=0 // pred_region
    _
  $region9: #{tpu_custom_call.1} parent=0 // pred_fallthru
    _
  // Predicated region
  $region10: #{tpu_custom_call.1} parent=0 // pred_check
    _
  $region11: #{tpu_custom_call.1} parent=0 // pred_check_branch
    %13 = sbr.rel (0) target = $region13
  $region12: #{tpu_custom_call.1} parent=0 // pred_region
    _
  $region13: #{tpu_custom_call.1} parent=0 // pred_fallthru
    _
  %v14 = vld [vmem:[%s0] sm:$0xff]
  %v15 = vld [vmem:[%s0 + $0x8] sm:$0xff]
  %v16 = vld [vmem:[%s0 + $0x10] sm:$0xff]
  %v17 = vld [vmem:[%s0 + $0x18] sm:$0xff]
  %v18 = vld [vmem:[%s0 + $0x20] sm:$0xff]
  %v19 = vld [vmem:[%s0 + $0x28] sm:$0xff]
  %v20 = vld [vmem:[%s0 + $0x30] sm:$0xff]
  %v21 = vld [vmem:[%s0 + $0x38] sm:$0xff]
  %v22 = vld [vmem:[%s0 + $0x40] sm:$0xff]
  %v23 = vld [vmem:[%s0 + $0x48] sm:$0xff]
  %v24 = vld [vmem:[%s0 + $0x50] sm:$0xff]
  %v25 = vld [vmem:[%s0 + $0x58] sm:$0xff]
  %v26 = vld [vmem:[%s0 + $0x60] sm:$0xff]
  %v27 = vld [vmem:[%s0 + $0x68] sm:$0xff]
  %v28 = vld [vmem:[%s0 + $0x70] sm:$0xff]
  %v29 = vld [vmem:[%s0 + $0x78] sm:$0xff]
  %v30 = vld [vmem:[%s0 + $0x80] sm:$0xff]
  %v31 = vld [vmem:[%s0 + $0x88] sm:$0xff]
  %v32 = vld [vmem:[%s0 + $0x90] sm:$0xff]
  %v33 = vld [vmem:[%s0 + $0x98] sm:$0xff]
  %v34 = vld [vmem:[%s0 + $0xa0] sm:$0xff]
  %v35 = vld [vmem:[%s0 + $0xa8] sm:$0xff]
  %v36 = vld [vmem:[%s0 + $0xb0] sm:$0xff]
  %v37 = vld [vmem:[%s0 + $0xb8] sm:$0xff]
  %v38 = vld [vmem:[%s0 + $0xc0] sm:$0xff]
  %v39 = vld [vmem:[%s0 + $0xc8] sm:$0xff]
  %v40 = vld [vmem:[%s0 + $0xd0] sm:$0xff]
  %v41 = vld [vmem:[%s0 + $0xd8] sm:$0xff]
  %v42 = vld [vmem:[%s0 + $0xe0] sm:$0xff]
  %v43 = vld [vmem:[%s0 + $0xe8] sm:$0xff]
  %v44 = vld [vmem:[%s0 + $0xf0] sm:$0xff]
  %v45 = vld [vmem:[%s0 + $0xf8] sm:$0xff]
  %v46 = vld [vmem:[%s0 + $0x100] sm:$0xff]
  %v47 = vld [vmem:[%s0 + $0x108] sm:$0xff]
  %v48 = vld [vmem:[%s0 + $0x110] sm:$0xff]
  %v49 = vld [vmem:[%s0 + $0x118] sm:$0xff]
  %v50 = vld [vmem:[%s0 + $0x120] sm:$0xff]
  %v51 = vld [vmem:[%s0 + $0x128] sm:$0xff]
  %v52 = vld [vmem:[%s0 + $0x130] sm:$0xff]
  %v53 = vld [vmem:[%s0 + $0x138] sm:$0xff]
  %v54 = vld [vmem:[%s0 + $0x140] sm:$0xff]
  %v55 = vld [vmem:[%s0 + $0x148] sm:$0xff]
  %v56 = vld [vmem:[%s0 + $0x150] sm:$0xff]
  %v57 = vld [vmem:[%s0 + $0x158] sm:$0xff]
  %v58 = vld [vmem:[%s0 + $0x160] sm:$0xff]
  %v59 = vld [vmem:[%s0 + $0x168] sm:$0xff]
  %v60 = vld [vmem:[%s0 + $0x170] sm:$0xff]
  %v61 = vld [vmem:[%s0 + $0x178] sm:$0xff]
  %v62 = vld [vmem:[%s0 + $0x180] sm:$0xff]
  %v63 = vld [vmem:[%s1] sm:$0xff]
  %v64 = vld [vmem:[%s1 + $0x8] sm:$0xff]
  %v65 = vld [vmem:[%s1 + $0x10] sm:$0xff]
  %v66 = vld [vmem:[%s1 + $0x18] sm:$0xff]
  %v67 = vld [vmem:[%s1 + $0x20] sm:$0xf]
  %v68 = vld [vmem:[%s2] sm:$0x1]
  %v70 = vperm.slane %v68, 0
  %vm72 = vcmask 293888
  %v74 = vsel %vm72, %v14, 0
  %v77 = vsel %vm72, %v15, 0
  %v80 = vsel %vm72, %v16, 0
  %v83 = vsel %vm72, %v17, 0
  %v86 = vsel %vm72, %v18, 0
  %v89 = vsel %vm72, %v19, 0
  %v92 = vsel %vm72, %v20, 0
  %v95 = vsel %vm72, %v21, 0
  %v98 = vsel %vm72, %v22, 0
  %v101 = vsel %vm72, %v23, 0
  %v104 = vsel %vm72, %v24, 0
  %v107 = vsel %vm72, %v25, 0
  %v110 = vsel %vm72, %v26, 0
  %v113 = vsel %vm72, %v27, 0
  %v116 = vsel %vm72, %v28, 0
  %v119 = vsel %vm72, %v29, 0
  %v122 = vsel %vm72, %v30, 0
  %v125 = vsel %vm72, %v31, 0
  %v128 = vsel %vm72, %v32, 0
  %v131 = vsel %vm72, %v33, 0
  %v134 = vsel %vm72, %v34, 0
  %v137 = vsel %vm72, %v35, 0
  %v140 = vsel %vm72, %v36, 0
  %v143 = vsel %vm72, %v37, 0
  %v146 = vsel %vm72, %v38, 0
  %v149 = vsel %vm72, %v39, 0
  %v152 = vsel %vm72, %v40, 0
  %v155 = vsel %vm72, %v41, 0
  %v158 = vsel %vm72, %v42, 0
  %v161 = vsel %vm72, %v43, 0
  %v164 = vsel %vm72, %v44, 0
  %v167 = vsel %vm72, %v45, 0
  %v170 = vsel %vm72, %v46, 0
  %v173 = vsel %vm72, %v47, 0
  %v176 = vsel %vm72, %v48, 0
  %v179 = vsel %vm72, %v49, 0
  %v182 = vsel %vm72, %v50, 0
  %v185 = vsel %vm72, %v51, 0
  %v188 = vsel %vm72, %v52, 0
  %v191 = vsel %vm72, %v53, 0
  %v194 = vsel %vm72, %v54, 0
  %v197 = vsel %vm72, %v55, 0
  %v200 = vsel %vm72, %v56, 0
  %v203 = vsel %vm72, %v57, 0
  %v206 = vsel %vm72, %v58, 0
  %v209 = vsel %vm72, %v59, 0
  %v212 = vsel %vm72, %v60, 0
  %v215 = vsel %vm72, %v61, 0
  %v218 = vsel %vm72, %v62, 0
  %vm220 = vcmask 1043456
  %v222 = vsel %vm220, %v67, 0
  %224 = vmatpush.msra.mxu0 0.0
  %225 = vmatpush.msra.mxu0 0.0
  %226 = vmatpush.msra.mxu0 0.0
  %227 = vmatpush.msra.mxu0 0.0
  %228 = vmatpush.msra.mxu0 0.0
  %229 = vmatpush.msra.mxu0 0.0
  %230 = vmatpush.msra.mxu0 0.0
  %231 = vmatpush.msra.mxu0 0.0
  %232 = vmatpush.msra.mxu0 0.0
  %233 = vmatpush.msra.mxu0 0.0
  %234 = vmatpush.msra.mxu0 0.0
  %235 = vmatpush.msra.mxu0 %v222
  %236 = vmatpush.msra.mxu0 %v66
  %237 = vmatpush.msra.mxu0 %v65
  %238 = vmatpush.msra.mxu0 %v64
  %239 = vmatpush.msra.mxu0 %v63
  %240 = vmatmul.f32.gmra.mxu0 %v74
  %v241 = vpop.f32.mrf.mxu0
  %v242 = vadd.f32 %v70, %v241
  %243 = vmatmul.f32.gmra.mxu0 %v77
  %v244 = vpop.f32.mrf.mxu0
  %v245 = vadd.f32 %v70, %v244
  %246 = vmatmul.f32.gmra.mxu0 %v80
  %v247 = vpop.f32.mrf.mxu0
  %v248 = vadd.f32 %v70, %v247
  %249 = vmatmul.f32.gmra.mxu0 %v83
  %v250 = vpop.f32.mrf.mxu0
  %v251 = vadd.f32 %v70, %v250
  %252 = vmatmul.f32.gmra.mxu0 %v86
  %v253 = vpop.f32.mrf.mxu0
  %v254 = vadd.f32 %v70, %v253
  %255 = vmatmul.f32.gmra.mxu0 %v89
  %v256 = vpop.f32.mrf.mxu0
  %v257 = vadd.f32 %v70, %v256
  %258 = vmatmul.f32.gmra.mxu0 %v92
  %v259 = vpop.f32.mrf.mxu0
  %v260 = vadd.f32 %v70, %v259
  %261 = vmatmul.f32.gmra.mxu0 %v95
  %v262 = vpop.f32.mrf.mxu0
  %v263 = vadd.f32 %v70, %v262
  %264 = vmatmul.f32.gmra.mxu0 %v98
  %v265 = vpop.f32.mrf.mxu0
  %v266 = vadd.f32 %v70, %v265
  %267 = vmatmul.f32.gmra.mxu0 %v101
  %v268 = vpop.f32.mrf.mxu0
  %v269 = vadd.f32 %v70, %v268
  %270 = vmatmul.f32.gmra.mxu0 %v104
  %v271 = vpop.f32.mrf.mxu0
  %v272 = vadd.f32 %v70, %v271
  %273 = vmatmul.f32.gmra.mxu0 %v107
  %v274 = vpop.f32.mrf.mxu0
  %v275 = vadd.f32 %v70, %v274
  %276 = vmatmul.f32.gmra.mxu0 %v110
  %v277 = vpop.f32.mrf.mxu0
  %v278 = vadd.f32 %v70, %v277
  %279 = vmatmul.f32.gmra.mxu0 %v113
  %v280 = vpop.f32.mrf.mxu0
  %v281 = vadd.f32 %v70, %v280
  %282 = vmatmul.f32.gmra.mxu0 %v116
  %v283 = vpop.f32.mrf.mxu0
  %v284 = vadd.f32 %v70, %v283
  %285 = vmatmul.f32.gmra.mxu0 %v119
  %v286 = vpop.f32.mrf.mxu0
  %v287 = vadd.f32 %v70, %v286
  %288 = vmatmul.f32.gmra.mxu0 %v122
  %v289 = vpop.f32.mrf.mxu0
  %v290 = vadd.f32 %v70, %v289
  %291 = vmatmul.f32.gmra.mxu0 %v125
  %v292 = vpop.f32.mrf.mxu0
  %v293 = vadd.f32 %v70, %v292
  %294 = vmatmul.f32.gmra.mxu0 %v128
  %v295 = vpop.f32.mrf.mxu0
  %v296 = vadd.f32 %v70, %v295
  %297 = vmatmul.f32.gmra.mxu0 %v131
  %v298 = vpop.f32.mrf.mxu0
  %v299 = vadd.f32 %v70, %v298
  %300 = vmatmul.f32.gmra.mxu0 %v134
  %v301 = vpop.f32.mrf.mxu0
  %v302 = vadd.f32 %v70, %v301
  %303 = vmatmul.f32.gmra.mxu0 %v137
  %v304 = vpop.f32.mrf.mxu0
  %v305 = vadd.f32 %v70, %v304
  %306 = vmatmul.f32.gmra.mxu0 %v140
  %v307 = vpop.f32.mrf.mxu0
  %v308 = vadd.f32 %v70, %v307
  %309 = vmatmul.f32.gmra.mxu0 %v143
  %v310 = vpop.f32.mrf.mxu0
  %v311 = vadd.f32 %v70, %v310
  %312 = vmatmul.f32.gmra.mxu0 %v146
  %v313 = vpop.f32.mrf.mxu0
  %v314 = vadd.f32 %v70, %v313
  %315 = vmatmul.f32.gmra.mxu0 %v149
  %v316 = vpop.f32.mrf.mxu0
  %v317 = vadd.f32 %v70, %v316
  %318 = vmatmul.f32.gmra.mxu0 %v152
  %v319 = vpop.f32.mrf.mxu0
  %v320 = vadd.f32 %v70, %v319
  %321 = vmatmul.f32.gmra.mxu0 %v155
  %v322 = vpop.f32.mrf.mxu0
  %v323 = vadd.f32 %v70, %v322
  %324 = vmatmul.f32.gmra.mxu0 %v158
  %v325 = vpop.f32.mrf.mxu0
  %v326 = vadd.f32 %v70, %v325
  %327 = vmatmul.f32.gmra.mxu0 %v161
  %v328 = vpop.f32.mrf.mxu0
  %v329 = vadd.f32 %v70, %v328
  %330 = vmatmul.f32.gmra.mxu0 %v164
  %v331 = vpop.f32.mrf.mxu0
  %v332 = vadd.f32 %v70, %v331
  %333 = vmatmul.f32.gmra.mxu0 %v167
  %v334 = vpop.f32.mrf.mxu0
  %v335 = vadd.f32 %v70, %v334
  %336 = vmatmul.f32.gmra.mxu0 %v170
  %v337 = vpop.f32.mrf.mxu0
  %v338 = vadd.f32 %v70, %v337
  %339 = vmatmul.f32.gmra.mxu0 %v173
  %v340 = vpop.f32.mrf.mxu0
  %v341 = vadd.f32 %v70, %v340
  %342 = vmatmul.f32.gmra.mxu0 %v176
  %v343 = vpop.f32.mrf.mxu0
  %v344 = vadd.f32 %v70, %v343
  %345 = vmatmul.f32.gmra.mxu0 %v179
  %v346 = vpop.f32.mrf.mxu0
  %v347 = vadd.f32 %v70, %v346
  %348 = vmatmul.f32.gmra.mxu0 %v182
  %v349 = vpop.f32.mrf.mxu0
  %v350 = vadd.f32 %v70, %v349
  %351 = vmatmul.f32.gmra.mxu0 %v185
  %v352 = vpop.f32.mrf.mxu0
  %v353 = vadd.f32 %v70, %v352
  %354 = vmatmul.f32.gmra.mxu0 %v188
  %v355 = vpop.f32.mrf.mxu0
  %v356 = vadd.f32 %v70, %v355
  %357 = vmatmul.f32.gmra.mxu0 %v191
  %v358 = vpop.f32.mrf.mxu0
  %v359 = vadd.f32 %v70, %v358
  %360 = vmatmul.f32.gmra.mxu0 %v194
  %v361 = vpop.f32.mrf.mxu0
  %v362 = vadd.f32 %v70, %v361
  %363 = vmatmul.f32.gmra.mxu0 %v197
  %v364 = vpop.f32.mrf.mxu0
  %v365 = vadd.f32 %v70, %v364
  %366 = vmatmul.f32.gmra.mxu0 %v200
  %v367 = vpop.f32.mrf.mxu0
  %v368 = vadd.f32 %v70, %v367
  %369 = vmatmul.f32.gmra.mxu0 %v203
  %v370 = vpop.f32.mrf.mxu0
  %v371 = vadd.f32 %v70, %v370
  %372 = vmatmul.f32.gmra.mxu0 %v206
  %v373 = vpop.f32.mrf.mxu0
  %v374 = vadd.f32 %v70, %v373
  %375 = vmatmul.f32.gmra.mxu0 %v209
  %v376 = vpop.f32.mrf.mxu0
  %v377 = vadd.f32 %v70, %v376
  %378 = vmatmul.f32.gmra.mxu0 %v212
  %v379 = vpop.f32.mrf.mxu0
  %v380 = vadd.f32 %v70, %v379
  %381 = vmatmul.f32.gmra.mxu0 %v215
  %v382 = vpop.f32.mrf.mxu0
  %v383 = vadd.f32 %v70, %v382
  %384 = vmatmul.f32.gmra.mxu0 %v218
  %v385 = vpop.f32.mrf.mxu0
  %v386 = vadd.f32 %v70, %v385
  %387 = vdwg.mxu0
  %v388 = vmax.f32 %v242, 0.0
  %v389 = vmax.f32 %v245, 0.0
  %v390 = vmax.f32 %v248, 0.0
  %v391 = vmax.f32 %v251, 0.0
  %v392 = vmax.f32 %v254, 0.0
  %v393 = vmax.f32 %v257, 0.0
  %v394 = vmax.f32 %v260, 0.0
  %v395 = vmax.f32 %v263, 0.0
  %v396 = vmax.f32 %v266, 0.0
  %v397 = vmax.f32 %v269, 0.0
  %v398 = vmax.f32 %v272, 0.0
  %v399 = vmax.f32 %v275, 0.0
  %v400 = vmax.f32 %v278, 0.0
  %v401 = vmax.f32 %v281, 0.0
  %v402 = vmax.f32 %v284, 0.0
  %v403 = vmax.f32 %v287, 0.0
  %v404 = vmax.f32 %v290, 0.0
  %v405 = vmax.f32 %v293, 0.0
  %v406 = vmax.f32 %v296, 0.0
  %v407 = vmax.f32 %v299, 0.0
  %v408 = vmax.f32 %v302, 0.0
  %v409 = vmax.f32 %v305, 0.0
  %v410 = vmax.f32 %v308, 0.0
  %v411 = vmax.f32 %v311, 0.0
  %v412 = vmax.f32 %v314, 0.0
  %v413 = vmax.f32 %v317, 0.0
  %v414 = vmax.f32 %v320, 0.0
  %v415 = vmax.f32 %v323, 0.0
  %v416 = vmax.f32 %v326, 0.0
  %v417 = vmax.f32 %v329, 0.0
  %v418 = vmax.f32 %v332, 0.0
  %v419 = vmax.f32 %v335, 0.0
  %v420 = vmax.f32 %v338, 0.0
  %v421 = vmax.f32 %v341, 0.0
  %v422 = vmax.f32 %v344, 0.0
  %v423 = vmax.f32 %v347, 0.0
  %v424 = vmax.f32 %v350, 0.0
  %v425 = vmax.f32 %v353, 0.0
  %v426 = vmax.f32 %v356, 0.0
  %v427 = vmax.f32 %v359, 0.0
  %v428 = vmax.f32 %v362, 0.0
  %v429 = vmax.f32 %v365, 0.0
  %v430 = vmax.f32 %v368, 0.0
  %v431 = vmax.f32 %v371, 0.0
  %v432 = vmax.f32 %v374, 0.0
  %v433 = vmax.f32 %v377, 0.0
  %v434 = vmax.f32 %v380, 0.0
  %v435 = vmax.f32 %v383, 0.0
  %v436 = vmax.f32 %v386, 0.0
  %vm437 = vcmask 64512
  %438 = vst.msk [vmem:[%s3] sm:$0xff] %vm437, %v388
  %439 = vst.msk [vmem:[%s3 + $0x8] sm:$0xff] %vm437, %v389
  %440 = vst.msk [vmem:[%s3 + $0x10] sm:$0xff] %vm437, %v390
  %441 = vst.msk [vmem:[%s3 + $0x18] sm:$0xff] %vm437, %v391
  %442 = vst.msk [vmem:[%s3 + $0x20] sm:$0xff] %vm437, %v392
  %443 = vst.msk [vmem:[%s3 + $0x28] sm:$0xff] %vm437, %v393
  %444 = vst.msk [vmem:[%s3 + $0x30] sm:$0xff] %vm437, %v394
  %445 = vst.msk [vmem:[%s3 + $0x38] sm:$0xff] %vm437, %v395
  %446 = vst.msk [vmem:[%s3 + $0x40] sm:$0xff] %vm437, %v396
  %447 = vst.msk [vmem:[%s3 + $0x48] sm:$0xff] %vm437, %v397
  %448 = vst.msk [vmem:[%s3 + $0x50] sm:$0xff] %vm437, %v398
  %449 = vst.msk [vmem:[%s3 + $0x58] sm:$0xff] %vm437, %v399
  %450 = vst.msk [vmem:[%s3 + $0x60] sm:$0xff] %vm437, %v400
  %451 = vst.msk [vmem:[%s3 + $0x68] sm:$0xff] %vm437, %v401
  %452 = vst.msk [vmem:[%s3 + $0x70] sm:$0xff] %vm437, %v402
  %453 = vst.msk [vmem:[%s3 + $0x78] sm:$0xff] %vm437, %v403
  %454 = vst.msk [vmem:[%s3 + $0x80] sm:$0xff] %vm437, %v404
  %455 = vst.msk [vmem:[%s3 + $0x88] sm:$0xff] %vm437, %v405
  %456 = vst.msk [vmem:[%s3 + $0x90] sm:$0xff] %vm437, %v406
  %457 = vst.msk [vmem:[%s3 + $0x98] sm:$0xff] %vm437, %v407
  %458 = vst.msk [vmem:[%s3 + $0xa0] sm:$0xff] %vm437, %v408
  %459 = vst.msk [vmem:[%s3 + $0xa8] sm:$0xff] %vm437, %v409
  %460 = vst.msk [vmem:[%s3 + $0xb0] sm:$0xff] %vm437, %v410
  %461 = vst.msk [vmem:[%s3 + $0xb8] sm:$0xff] %vm437, %v411
  %462 = vst.msk [vmem:[%s3 + $0xc0] sm:$0xff] %vm437, %v412
  %463 = vst.msk [vmem:[%s3 + $0xc8] sm:$0xff] %vm437, %v413
  %464 = vst.msk [vmem:[%s3 + $0xd0] sm:$0xff] %vm437, %v414
  %465 = vst.msk [vmem:[%s3 + $0xd8] sm:$0xff] %vm437, %v415
  %466 = vst.msk [vmem:[%s3 + $0xe0] sm:$0xff] %vm437, %v416
  %467 = vst.msk [vmem:[%s3 + $0xe8] sm:$0xff] %vm437, %v417
  %468 = vst.msk [vmem:[%s3 + $0xf0] sm:$0xff] %vm437, %v418
  %469 = vst.msk [vmem:[%s3 + $0xf8] sm:$0xff] %vm437, %v419
  %470 = vst.msk [vmem:[%s3 + $0x100] sm:$0xff] %vm437, %v420
  %471 = vst.msk [vmem:[%s3 + $0x108] sm:$0xff] %vm437, %v421
  %472 = vst.msk [vmem:[%s3 + $0x110] sm:$0xff] %vm437, %v422
  %473 = vst.msk [vmem:[%s3 + $0x118] sm:$0xff] %vm437, %v423
  %474 = vst.msk [vmem:[%s3 + $0x120] sm:$0xff] %vm437, %v424
  %475 = vst.msk [vmem:[%s3 + $0x128] sm:$0xff] %vm437, %v425
  %476 = vst.msk [vmem:[%s3 + $0x130] sm:$0xff] %vm437, %v426
  %477 = vst.msk [vmem:[%s3 + $0x138] sm:$0xff] %vm437, %v427
  %478 = vst.msk [vmem:[%s3 + $0x140] sm:$0xff] %vm437, %v428
  %479 = vst.msk [vmem:[%s3 + $0x148] sm:$0xff] %vm437, %v429
  %480 = vst.msk [vmem:[%s3 + $0x150] sm:$0xff] %vm437, %v430
  %481 = vst.msk [vmem:[%s3 + $0x158] sm:$0xff] %vm437, %v431
  %482 = vst.msk [vmem:[%s3 + $0x160] sm:$0xff] %vm437, %v432
  %483 = vst.msk [vmem:[%s3 + $0x168] sm:$0xff] %vm437, %v433
  %484 = vst.msk [vmem:[%s3 + $0x170] sm:$0xff] %vm437, %v434
  %485 = vst.msk [vmem:[%s3 + $0x178] sm:$0xff] %vm437, %v435
  %486 = vst.msk [vmem:[%s3 + $0x180] sm:$0xff] %vm437, %v436
  // Predicated region
  $region14: #{tpu_custom_call.1} parent=0 // pred_check
    _
  $region15: #{tpu_custom_call.1} parent=0 // pred_check_branch
    %488 = sbr.rel (0) target = $region17
  $region16: #{tpu_custom_call.1} parent=0 // pred_region
    _
  $region17: #{tpu_custom_call.1} parent=0 // pred_fallthru
    _
  // Predicated region
  $region18: #{tpu_custom_call.1} parent=0 // pred_check
    _
  $region19: #{tpu_custom_call.1} parent=0 // pred_check_branch
    %490 = sbr.rel (0) target = $region21
  $region20: #{tpu_custom_call.1} parent=0 // pred_region
    _
  $region21: #{tpu_custom_call.1} parent=0 // pred_fallthru
    _

</llo_original>
